<compile_context>
chip_gen: v5e
topology: v5e:2x2
jax: 0.10.0
libtpu: 0.0.40
codegen_flags: <defaults>
</compile_context>

<pallas_src>
import math

import jax
import jax.numpy as jnp
from jax.experimental import pallas as pl
from jax.experimental.pallas import tpu as pltpu

_LANE = 128


def _round_up(x, m):
    return (x + m - 1) // m * m


def _pad2d(a, rows, cols):
    r, c = a.shape
    if r == rows and c == cols:
        return a
    return jnp.pad(a, ((0, rows - r), (0, cols - c)))


def _vmem_plan():
    """Generation-aware (vmem_limit_bytes, planning_budget, small_vmem)."""
    try:
        info = pltpu.get_tpu_info()
        cap = int(getattr(info, "vmem_capacity_bytes", 0)) or 64 * 1024 * 1024
    except Exception:
        cap = 64 * 1024 * 1024
    if cap >= 100 * 1024 * 1024:          # v5e / v6e: 128 MiB VMEM
        return 96 * 1024 * 1024, 64 * 1024 * 1024, False
    # v7x-like: 64 MiB per TensorCore -> keep compiler-scratch headroom.
    return 44 * 1024 * 1024, 24 * 1024 * 1024, True


# ---------------------------------------------------------------------------
# Fused two-layer kernel: whole (padded) problem resident in VMEM.
# ---------------------------------------------------------------------------
def _gcn_fused_kernel(adj_ref, x_ref, w1_ref, b1_ref, w2_ref, b2_ref, o_ref):
    adj = adj_ref[...]                                         # bf16 [N, N]
    # Layer 1: relu(adj @ (x @ W1) + b1)   -- adj @ (xW) ordering.
    xw1 = jnp.dot(x_ref[...], w1_ref[...],
                  preferred_element_type=jnp.float32)          # [N, H] f32
    h = jnp.dot(adj, xw1.astype(jnp.bfloat16),
                preferred_element_type=jnp.float32)
    h = jnp.maximum(h + b1_ref[...], 0.0)                      # f32 epilogue
    # TODO(synk): training-mode dropout (pltpu.prng_seed / prng_random_bits)
    # not implemented; inference (identity) semantics used here.
    # Layer 2: relu(adj @ (h @ W2) + b2)
    hw2 = jnp.dot(h.astype(jnp.bfloat16), w2_ref[...],
                  preferred_element_type=jnp.float32)
    out = jnp.dot(adj, hw2.astype(jnp.bfloat16),
                  preferred_element_type=jnp.float32)
    o_ref[...] = jnp.maximum(out + b2_ref[...], 0.0).astype(o_ref.dtype)


def _gcn_fused(adj, x, w1, b1, w2, b2, vmem_limit):
    n = adj.shape[0]
    f_in_p = x.shape[1]
    h_p = w1.shape[1]
    flops = 2 * (n * f_in_p * h_p + n * n * h_p + n * h_p * h_p + n * n * h_p)
    bytes_accessed = int(sum(int(a.size) * a.dtype.itemsize
                             for a in (adj, x, w1, b1, w2, b2)) + n * h_p * 4)
    return pl.pallas_call(
        _gcn_fused_kernel,
        out_shape=jax.ShapeDtypeStruct((n, h_p), jnp.float32),
        in_specs=[
            pl.BlockSpec(adj.shape, lambda: (0, 0)),
            pl.BlockSpec(x.shape, lambda: (0, 0)),
            pl.BlockSpec(w1.shape, lambda: (0, 0)),
            pl.BlockSpec(b1.shape, lambda: (0, 0)),
            pl.BlockSpec(w2.shape, lambda: (0, 0)),
            pl.BlockSpec(b2.shape, lambda: (0, 0)),
        ],
        out_specs=pl.BlockSpec((n, h_p), lambda: (0, 0)),
        compiler_params=pltpu.CompilerParams(vmem_limit_bytes=vmem_limit),
        cost_estimate=pl.CostEstimate(flops=flops, transcendentals=0,
                                      bytes_accessed=bytes_accessed),
    )(adj, x, w1, b1, w2, b2)


def _fused_vmem_estimate(n_p, f_in_p, h_p):
    bf16, f32 = 2, 4
    est = bf16 * (n_p * n_p + n_p * f_in_p + f_in_p * h_p + h_p * h_p)  # inputs
    est += f32 * 2 * h_p                      # biases
    est += f32 * n_p * h_p                    # output
    est += 4 * f32 * n_p * h_p                # f32 intermediates
    est += 3 * bf16 * n_p * h_p               # bf16 casts
    return est


# ---------------------------------------------------------------------------
# Tiled path: hoisted xW kernel + adj row-strip kernel (bias+ReLU fused).
# ---------------------------------------------------------------------------
def _xw_tiled_kernel(x_ref, w_ref, o_ref):
    o_ref[...] = jnp.dot(x_ref[...], w_ref[...],
                         preferred_element_type=jnp.float32).astype(o_ref.dtype)


def _xw_tiled(x, w, tm, vmem_limit):
    n_p, f_in_p = x.shape
    f_out_p = w.shape[1]
    num_tiles = n_p // tm
    flops = 2 * n_p * f_in_p * f_out_p
    bytes_accessed = int(x.size * x.dtype.itemsize + w.size * w.dtype.itemsize
                         + n_p * f_out_p * 2)
    return pl.pallas_call(
        _xw_tiled_kernel,
        out_shape=jax.ShapeDtypeStruct((n_p, f_out_p), jnp.bfloat16),
        grid=(num_tiles,),
        in_specs=[
            pl.BlockSpec((tm, f_in_p), lambda i: (i, 0)),       # x row tile
            pl.BlockSpec((f_in_p, f_out_p), lambda i: (0, 0)),  # resident weight
        ],
        out_specs=pl.BlockSpec((tm, f_out_p), lambda i: (i, 0)),
        compiler_params=pltpu.CompilerParams(
            dimension_semantics=("parallel",),
            vmem_limit_bytes=vmem_limit),
        cost_estimate=pl.CostEstimate(flops=flops, transcendentals=0,
                                      bytes_accessed=bytes_accessed),
    )(x, w)


def _adj_xw_tiled_kernel(adj_ref, xw_ref, b_ref, o_ref):
    out = jnp.dot(adj_ref[...], xw_ref[...], preferred_element_type=jnp.float32)
    o_ref[...] = jnp.maximum(out + b_ref[...], 0.0).astype(o_ref.dtype)


def _adj_xw_tiled(adj, xw, b, tm, out_dtype, vmem_limit):
    n_p = adj.shape[0]
    f_out_p = xw.shape[1]
    num_tiles = n_p // tm
    flops = 2 * n_p * n_p * f_out_p
    bytes_accessed = int(adj.size * adj.dtype.itemsize
                         + xw.size * xw.dtype.itemsize
                         + b.size * b.dtype.itemsize
                         + n_p * f_out_p * jnp.dtype(out_dtype).itemsize)
    return pl.pallas_call(
        _adj_xw_tiled_kernel,
        out_shape=jax.ShapeDtypeStruct((n_p, f_out_p), out_dtype),
        grid=(num_tiles,),
        in_specs=[
            pl.BlockSpec((tm, n_p), lambda i: (i, 0)),          # adj row strip
            pl.BlockSpec((n_p, f_out_p), lambda i: (0, 0)),     # resident xW (bf16)
            pl.BlockSpec((1, f_out_p), lambda i: (0, 0)),       # bias (hoisted)
        ],
        out_specs=pl.BlockSpec((tm, f_out_p), lambda i: (i, 0)),
        compiler_params=pltpu.CompilerParams(
            dimension_semantics=("parallel",),
            vmem_limit_bytes=vmem_limit),
        cost_estimate=pl.CostEstimate(flops=flops, transcendentals=0,
                                      bytes_accessed=bytes_accessed),
    )(adj, xw, b)


def _choose_row_tile(n_p, f_out_p, budget, need_two_tiles):
    """Largest MXU-friendly row tile whose per-step footprint fits the budget."""
    bf16, f32 = 2, 4
    cands = [t for t in (1024, 512, 256, 128) if n_p % t == 0]
    if need_two_tiles and n_p >= 2 * _LANE:
        cands = [t for t in cands if n_p // t >= 2] or [_LANE]
    if not cands:
        cands = [_LANE]
    for t in cands:
        per_step = (2 * bf16 * t * n_p          # adj row strip, double-buffered
                    + bf16 * n_p * f_out_p      # resident xW
                    + f32 * f_out_p             # bias
                    + 2 * f32 * t * f_out_p     # output tile, double-buffered
                    + f32 * t * f_out_p)        # f32 accumulator / epilogue
        if per_step <= budget:
            return t
    return cands[-1]


# ---------------------------------------------------------------------------
# Public forward.
# ---------------------------------------------------------------------------
def gcn_dense_forward(x, adj, params, dropout_rate=0.5, training=False,
                      mode="auto"):
    """relu(adj @ x @ W1 + b1) -> dropout -> relu(adj @ h @ W2 + b2)."""
    w1, b1, w2, b2 = params["w1"], params["b1"], params["w2"], params["b2"]
    n, f_in = x.shape
    h_dim = w1.shape[1]
    assert adj.shape == (n, n)
    assert w2.shape == (h_dim, h_dim)

    if training and dropout_rate > 0.0:
        # TODO(synk): stochastic dropout not implemented; inference (identity)
        # semantics are used to keep the forward deterministic.
        pass

    vmem_limit, vmem_budget, small_vmem = _vmem_plan()

    # Lane-dense padding: feature dims AND the graph dim N go to multiples of
    # 128 (adj's last dim is a lane dim and the MXU K contraction).
    f_in_p = _round_up(f_in, _LANE)
    h_p = _round_up(h_dim, _LANE)
    n_p = _round_up(n, _LANE)

    if mode == "auto":
        fits_fused = _fused_vmem_estimate(n_p, f_in_p, h_p) <= vmem_budget
        if small_vmem:
            # v7x-like: prefer the ("parallel",) tiled path (uses both TCs)
            # unless the graph is tiny.
            mode = "fused" if (fits_fused and n_p <= 512) else "tiled"
        else:
            mode = "fused" if fits_fused else "tiled"

    # Zero-padding is exact: padded adj columns are zero, so padded rows of the
    # intermediates never contribute to un-padded outputs; padded output
    # rows/columns are sliced off below.
    adj_p = _pad2d(adj, n_p, n_p).astype(jnp.bfloat16)
    x_p = _pad2d(x, n_p, f_in_p).astype(jnp.bfloat16)
    w1_p = _pad2d(w1, f_in_p, h_p).astype(jnp.bfloat16)
    w2_p = _pad2d(w2, h_p, h_p).astype(jnp.bfloat16)
    b1_p = _pad2d(b1.reshape(1, -1), 1, h_p).astype(jnp.float32)
    b2_p = _pad2d(b2.reshape(1, -1), 1, h_p).astype(jnp.float32)

    if mode == "fused":
        out_p = _gcn_fused(adj_p, x_p, w1_p, b1_p, w2_p, b2_p, vmem_limit)
    else:
        tm = _choose_row_tile(n_p, h_p, vmem_budget, small_vmem)
        # Layer 1: hoisted xW (computed once), adj row tiles, bf16 writeback.
        xw1 = _xw_tiled(x_p, w1_p, tm, vmem_limit)
        h = _adj_xw_tiled(adj_p, xw1, b1_p, tm, jnp.bfloat16, vmem_limit)
        # Layer 2: hoisted hW2, f32 output.
        hw2 = _xw_tiled(h, w2_p, tm, vmem_limit)
        out_p = _adj_xw_tiled(adj_p, hw2, b2_p, tm, jnp.float32, vmem_limit)

    return out_p[:n, :h_dim]


def init_params(key, n_feat, n_hid):
    """Mirrors GraphConvolution.reset_parameters: uniform(-stdv, stdv),
    stdv = 1/sqrt(out_features)."""
    k1, k2, k3, k4 = jax.random.split(key, 4)
    stdv1 = 1.0 / math.sqrt(n_hid)
    stdv2 = 1.0 / math.sqrt(n_hid)
    return {
        "w1": jax.random.uniform(k1, (n_feat, n_hid), jnp.float32, -stdv1, stdv1),
        "b1": jax.random.uniform(k2, (n_hid,), jnp.float32, -stdv1, stdv1),
        "w2": jax.random.uniform(k3, (n_hid, n_hid), jnp.float32, -stdv2, stdv2),
        "b2": jax.random.uniform(k4, (n_hid,), jnp.float32, -stdv2, stdv2),
    }


if __name__ == "__main__":
    def make_inputs(key, n, n_feat, n_hid):
        k_x, k_adj, k_p = jax.random.split(key, 3)
        x = jax.random.normal(k_x, (n, n_feat), jnp.float32)
        a = jax.random.uniform(k_adj, (n, n), jnp.float32)
        a = (a + a.T) * 0.5 + jnp.eye(n, dtype=jnp.float32)
        adj = a / jnp.sum(a, axis=1, keepdims=True)  # row-normalized
        params = init_params(k_p, n_feat, n_hid)
        return x, adj, params

    def reference(x, adj, params):
        h = jnp.maximum(adj @ x @ params["w1"] + params["b1"], 0.0)
        return jnp.maximum(adj @ h @ params["w2"] + params["b2"], 0.0)

    # jit the whole forward so pad/cast fuse with surrounding ops (no separate
    # per-call HBM pad/cast passes).
    fwd = jax.jit(gcn_dense_forward,
                  static_argnames=("dropout_rate", "training", "mode"))

    # 1) Small graph -> fused single-kernel path (auto).
    x1, adj1, p1 = make_inputs(jax.random.PRNGKey(0), 64, 48, 32)
    out1 = jax.block_until_ready(fwd(x1, adj1, p1))
    ref1 = reference(x1, adj1, p1)
    assert out1.shape == (64, 32)
    assert jnp.allclose(out1, ref1, atol=3e-2, rtol=3e-2), \
        ("fused max abs err", float(jnp.max(jnp.abs(out1 - ref1))))

    # 2) Larger graph -> row-tiled per-layer path (hoisted xW + adj row strips).
    x2, adj2, p2 = make_inputs(jax.random.PRNGKey(1), 384, 200, 96)
    out2 = jax.block_until_ready(fwd(x2, adj2, p2, mode="tiled"))
    ref2 = reference(x2, adj2, p2)
    assert out2.shape == (384, 96)
    assert jnp.allclose(out2, ref2, atol=3e-2, rtol=3e-2), \
        ("tiled max abs err", float(jnp.max(jnp.abs(out2 - ref2))))

    print("KERNEL_OK")
</pallas_src>

<mosaic_0001>
module attributes {stable_mosaic.version = 11 : i64} {
  func.func @_gcn_fused_kernel(%arg0: memref<128x128xbf16, #tpu.memory_space<vmem>>, %arg1: memref<128x128xbf16, #tpu.memory_space<vmem>>, %arg2: memref<128x128xbf16, #tpu.memory_space<vmem>>, %arg3: memref<1x128xf32, #tpu.memory_space<vmem>>, %arg4: memref<128x128xbf16, #tpu.memory_space<vmem>>, %arg5: memref<1x128xf32, #tpu.memory_space<vmem>>, %arg6: memref<128x128xf32, #tpu.memory_space<vmem>>) attributes {dimension_semantics = [], scalar_prefetch = 0 : i64, scratch_operands = 0 : i64, tpu.core_type = #tpu.core_type<tc>} {
    %c0 = arith.constant 0 : index
    %c0_0 = arith.constant 0 : index
    %0 = vector.load %arg0[%c0, %c0_0] : memref<128x128xbf16, #tpu.memory_space<vmem>>, vector<128x128xbf16>
    %c0_1 = arith.constant 0 : index
    %c0_2 = arith.constant 0 : index
    %1 = vector.load %arg1[%c0_1, %c0_2] : memref<128x128xbf16, #tpu.memory_space<vmem>>, vector<128x128xbf16>
    %c0_3 = arith.constant 0 : index
    %c0_4 = arith.constant 0 : index
    %2 = vector.load %arg2[%c0_3, %c0_4] : memref<128x128xbf16, #tpu.memory_space<vmem>>, vector<128x128xbf16>
    %cst = arith.constant dense<0.000000e+00> : vector<128x128xf32>
    %3 = tpu.matmul %1, %2, %cst {dimension_numbers = #tpu.dot_dimension_numbers<[1], [0], [0], [1], [0, 0, 1, 1], [], []>} : vector<128x128xbf16>, vector<128x128xbf16>, vector<128x128xf32> -> vector<128x128xf32>
    %4 = arith.truncf %3 : vector<128x128xf32> to vector<128x128xbf16>
    %cst_5 = arith.constant dense<0.000000e+00> : vector<128x128xf32>
    %5 = tpu.matmul %0, %4, %cst_5 {dimension_numbers = #tpu.dot_dimension_numbers<[1], [0], [0], [1], [0, 0, 1, 1], [], []>} : vector<128x128xbf16>, vector<128x128xbf16>, vector<128x128xf32> -> vector<128x128xf32>
    %c0_6 = arith.constant 0 : index
    %c0_7 = arith.constant 0 : index
    %6 = vector.load %arg3[%c0_6, %c0_7] : memref<1x128xf32, #tpu.memory_space<vmem>>, vector<1x128xf32>
    %7 = vector.broadcast %6 : vector<1x128xf32> to vector<128x128xf32>
    %8 = arith.addf %5, %7 : vector<128x128xf32>
    %cst_8 = arith.constant 0.000000e+00 : f32
    %9 = vector.broadcast %cst_8 : f32 to vector<128x128xf32>
    %10 = arith.maximumf %8, %9 : vector<128x128xf32>
    %11 = arith.truncf %10 : vector<128x128xf32> to vector<128x128xbf16>
    %c0_9 = arith.constant 0 : index
    %c0_10 = arith.constant 0 : index
    %12 = vector.load %arg4[%c0_9, %c0_10] : memref<128x128xbf16, #tpu.memory_space<vmem>>, vector<128x128xbf16>
    %cst_11 = arith.constant dense<0.000000e+00> : vector<128x128xf32>
    %13 = tpu.matmul %11, %12, %cst_11 {dimension_numbers = #tpu.dot_dimension_numbers<[1], [0], [0], [1], [0, 0, 1, 1], [], []>} : vector<128x128xbf16>, vector<128x128xbf16>, vector<128x128xf32> -> vector<128x128xf32>
    %14 = arith.truncf %13 : vector<128x128xf32> to vector<128x128xbf16>
    %cst_12 = arith.constant dense<0.000000e+00> : vector<128x128xf32>
    %15 = tpu.matmul %0, %14, %cst_12 {dimension_numbers = #tpu.dot_dimension_numbers<[1], [0], [0], [1], [0, 0, 1, 1], [], []>} : vector<128x128xbf16>, vector<128x128xbf16>, vector<128x128xf32> -> vector<128x128xf32>
    %c0_13 = arith.constant 0 : index
    %c0_14 = arith.constant 0 : index
    %16 = vector.load %arg5[%c0_13, %c0_14] : memref<1x128xf32, #tpu.memory_space<vmem>>, vector<1x128xf32>
    %17 = vector.broadcast %16 : vector<1x128xf32> to vector<128x128xf32>
    %18 = arith.addf %15, %17 : vector<128x128xf32>
    %cst_15 = arith.constant 0.000000e+00 : f32
    %19 = vector.broadcast %cst_15 : f32 to vector<128x128xf32>
    %20 = arith.maximumf %18, %19 : vector<128x128xf32>
    %c0_16 = arith.constant 0 : index
    %c0_17 = arith.constant 0 : index
    %21 = vector.load %arg6[%c0_16, %c0_17] : memref<128x128xf32, #tpu.memory_space<vmem>>, vector<128x128xf32>
    tpu.vector_store %arg6[%c0_16, %c0_17], %20 {strides = array<i32>} : memref<128x128xf32, #tpu.memory_space<vmem>>, vector<128x128xf32>,
    return
  }
}

</mosaic_0001>

<llo_original>
// kernel: gcn_dense_forward.1
$region0: #{gcn_dense_forward.1}
  #allocation0 [shape = 'u32[]', space=smem, size = 0x4, offset = 0x4, fixed_abs, tag = 'smem constant byte address 0x4 - core index']
  #allocation1 [shape = 'u32[72,128]{1,0:T(1,128)}', space=vmem, size = 0x9000, scoped, tag = 'internal scratch']
  %s0 = inlined_call_operand.vmem [shape: bf16[128,128], index: 0, kind: input, shape index: {}]
  %s1 = inlined_call_operand.vmem [shape: bf16[128,128], index: 1, kind: input, shape index: {}]
  %s2 = inlined_call_operand.vmem [shape: bf16[128,128], index: 2, kind: input, shape index: {}]
  %s3 = inlined_call_operand.vmem [shape: f32[1,128], index: 3, kind: input, shape index: {}]
  %s4 = inlined_call_operand.vmem [shape: bf16[128,128], index: 4, kind: input, shape index: {}]
  %s5 = inlined_call_operand.vmem [shape: f32[1,128], index: 5, kind: input, shape index: {}]
  %s6 = inlined_call_operand.vmem [shape: f32[128,128], index: 6, kind: output, shape index: {}]
  %s7 = sld [smem:[#allocation0]]
  $region34: #{gcn_dense_forward.1} parent=0
    _
  %s9 = ssub.s32 1, %s7
  %s10 = scalar_select 0, %s9, %s7
  // Predicated region
  $region2: #{gcn_dense_forward.1} parent=0 // pred_check
    _
  $region3: #{gcn_dense_forward.1} parent=0 // pred_check_branch
    %12 = sbr.rel (0) target = $region5
  $region4: #{gcn_dense_forward.1} parent=0 // pred_region
    _
  $region5: #{gcn_dense_forward.1} parent=0 // pred_fallthru
    _
  // Predicated region
  $region6: #{gcn_dense_forward.1} parent=0 // pred_check
    _
  $region7: #{gcn_dense_forward.1} parent=0 // pred_check_branch
    %14 = sbr.rel (0) target = $region9
  $region8: #{gcn_dense_forward.1} parent=0 // pred_region
    _
  $region9: #{gcn_dense_forward.1} parent=0 // pred_fallthru
    _
  // Predicated region
  $region10: #{gcn_dense_forward.1} parent=0 // pred_check
    _
  $region11: #{gcn_dense_forward.1} parent=0 // pred_check_branch
    %16 = sbr.rel (0) target = $region13
  $region12: #{gcn_dense_forward.1} parent=0 // pred_region
    _
  $region13: #{gcn_dense_forward.1} parent=0 // pred_fallthru
    _
  // Predicated region
  $region14: #{gcn_dense_forward.1} parent=0 // pred_check
    _
  $region15: #{gcn_dense_forward.1} parent=0 // pred_check_branch
    %18 = sbr.rel (0) target = $region17
  $region16: #{gcn_dense_forward.1} parent=0 // pred_region
    _
  $region17: #{gcn_dense_forward.1} parent=0 // pred_fallthru
    _
  // Predicated region
  $region18: #{gcn_dense_forward.1} parent=0 // pred_check
    _
  $region19: #{gcn_dense_forward.1} parent=0 // pred_check_branch
    %20 = sbr.rel (0) target = $region21
  $region20: #{gcn_dense_forward.1} parent=0 // pred_region
    _
  $region21: #{gcn_dense_forward.1} parent=0 // pred_fallthru
    _
  // Predicated region
  $region22: #{gcn_dense_forward.1} parent=0 // pred_check
    _
  $region23: #{gcn_dense_forward.1} parent=0 // pred_check_branch
    %22 = sbr.rel (0) target = $region25
  $region24: #{gcn_dense_forward.1} parent=0 // pred_region
    _
  $region25: #{gcn_dense_forward.1} parent=0 // pred_fallthru
    _
  %v23 = vld [vmem:[%s0] sm:$0xf]
  %v24 = vld [vmem:[%s0 + $0x4] sm:$0xf]
  %v25 = vld [vmem:[%s0 + $0x8] sm:$0xf]
  %v26 = vld [vmem:[%s0 + $0xc] sm:$0xf]
  %v27 = vld [vmem:[%s0 + $0x10] sm:$0xf]
  %v28 = vld [vmem:[%s0 + $0x14] sm:$0xf]
  %v29 = vld [vmem:[%s0 + $0x18] sm:$0xf]
  %v30 = vld [vmem:[%s0 + $0x1c] sm:$0xf]
  %v31 = vld [vmem:[%s0 + $0x20] sm:$0xf]
  %v32 = vld [vmem:[%s0 + $0x24] sm:$0xf]
  %v33 = vld [vmem:[%s0 + $0x28] sm:$0xf]
  %v34 = vld [vmem:[%s0 + $0x2c] sm:$0xf]
  %v35 = vld [vmem:[%s0 + $0x30] sm:$0xf]
  %v36 = vld [vmem:[%s0 + $0x34] sm:$0xf]
  %v37 = vld [vmem:[%s0 + $0x38] sm:$0xf]
  %v38 = vld [vmem:[%s0 + $0x3c] sm:$0xf]
  %v39 = vld [vmem:[%s1] sm:$0xf]
  %v40 = vld [vmem:[%s1 + $0x4] sm:$0xf]
  %v41 = vld [vmem:[%s1 + $0x8] sm:$0xf]
  %v42 = vld [vmem:[%s1 + $0xc] sm:$0xf]
  %v43 = vld [vmem:[%s1 + $0x10] sm:$0xf]
  %v44 = vld [vmem:[%s1 + $0x14] sm:$0xf]
  %v45 = vld [vmem:[%s1 + $0x18] sm:$0xf]
  %v46 = vld [vmem:[%s1 + $0x1c] sm:$0xf]
  %v47 = vld [vmem:[%s1 + $0x20] sm:$0xf]
  %v48 = vld [vmem:[%s1 + $0x24] sm:$0xf]
  %v49 = vld [vmem:[%s1 + $0x28] sm:$0xf]
  %v50 = vld [vmem:[%s1 + $0x2c] sm:$0xf]
  %v51 = vld [vmem:[%s1 + $0x30] sm:$0xf]
  %v52 = vld [vmem:[%s1 + $0x34] sm:$0xf]
  %v53 = vld [vmem:[%s1 + $0x38] sm:$0xf]
  %v54 = vld [vmem:[%s1 + $0x3c] sm:$0xf]
  %v55 = vld [vmem:[%s2] sm:$0xf]
  %v56 = vld [vmem:[%s2 + $0x4] sm:$0xf]
  %v57 = vld [vmem:[%s2 + $0x8] sm:$0xf]
  %v58 = vld [vmem:[%s2 + $0xc] sm:$0xf]
  %v59 = vld [vmem:[%s2 + $0x10] sm:$0xf]
  %v60 = vld [vmem:[%s2 + $0x14] sm:$0xf]
  %v61 = vld [vmem:[%s2 + $0x18] sm:$0xf]
  %v62 = vld [vmem:[%s2 + $0x1c] sm:$0xf]
  %v63 = vld [vmem:[%s2 + $0x20] sm:$0xf]
  %v64 = vld [vmem:[%s2 + $0x24] sm:$0xf]
  %v65 = vld [vmem:[%s2 + $0x28] sm:$0xf]
  %v66 = vld [vmem:[%s2 + $0x2c] sm:$0xf]
  %v67 = vld [vmem:[%s2 + $0x30] sm:$0xf]
  %v68 = vld [vmem:[%s2 + $0x34] sm:$0xf]
  %v69 = vld [vmem:[%s2 + $0x38] sm:$0xf]
  %v70 = vld [vmem:[%s2 + $0x3c] sm:$0xf]
  %v87 = vunpack.c.l.b16 %v39
  %v88 = vunpack.c.l.b16 %v40
  %v89 = vunpack.c.l.b16 %v41
  %v90 = vunpack.c.l.b16 %v42
  %v91 = vunpack.c.l.b16 %v43
  %v92 = vunpack.c.l.b16 %v44
  %v93 = vunpack.c.l.b16 %v45
  %v94 = vunpack.c.l.b16 %v46
  %v95 = vunpack.c.l.b16 %v47
  %v96 = vunpack.c.l.b16 %v48
  %v97 = vunpack.c.l.b16 %v49
  %v98 = vunpack.c.l.b16 %v50
  %v99 = vunpack.c.l.b16 %v51
  %v100 = vunpack.c.l.b16 %v52
  %v101 = vunpack.c.l.b16 %v53
  %v102 = vunpack.c.l.b16 %v54
  %v103 = vpack.c.b16 %v88, %v87
  %v104 = vpack.c.b16 %v90, %v89
  %v105 = vpack.c.b16 %v92, %v91
  %v106 = vpack.c.b16 %v94, %v93
  %v107 = vpack.c.b16 %v96, %v95
  %v108 = vpack.c.b16 %v98, %v97
  %v109 = vpack.c.b16 %v100, %v99
  %v110 = vpack.c.b16 %v102, %v101
  %v135 = vunpack.c.l.b16 %v55
  %v136 = vunpack.c.l.b16 %v56
  %v137 = vunpack.c.l.b16 %v57
  %v138 = vunpack.c.l.b16 %v58
  %v139 = vunpack.c.l.b16 %v59
  %v140 = vunpack.c.l.b16 %v60
  %v141 = vunpack.c.l.b16 %v61
  %v142 = vunpack.c.l.b16 %v62
  %v143 = vunpack.c.l.b16 %v63
  %v144 = vunpack.c.l.b16 %v64
  %v145 = vunpack.c.l.b16 %v65
  %v146 = vunpack.c.l.b16 %v66
  %v147 = vunpack.c.l.b16 %v67
  %v148 = vunpack.c.l.b16 %v68
  %v149 = vunpack.c.l.b16 %v69
  %v150 = vunpack.c.l.b16 %v70
  %v151 = vpack.c.b16 %v136, %v135
  %v152 = vpack.c.b16 %v138, %v137
  %v153 = vpack.c.b16 %v140, %v139
  %v154 = vpack.c.b16 %v142, %v141
  %v155 = vpack.c.b16 %v144, %v143
  %v156 = vpack.c.b16 %v146, %v145
  %v157 = vpack.c.b16 %v148, %v147
  %v158 = vpack.c.b16 %v150, %v149
  %167 = vmatpush.bf16.msra.mxu0 %v158
  %168 = vmatpush.bf16.msra.mxu0 %v157
  %169 = vmatpush.bf16.msra.mxu0 %v156
  %170 = vmatpush.bf16.msra.mxu0 %v155
  %171 = vmatpush.bf16.msra.mxu0 %v154
  %172 = vmatpush.bf16.msra.mxu0 %v153
  %173 = vmatpush.bf16.msra.mxu0 %v152
  %174 = vmatpush.bf16.msra.mxu0 %v151
  %175 = vmatmul.bf16.gmra.mxu0 %v103
  %v176 = vpop.f32.mrf.mxu0
  %v177 = vadd.f32 0.0, %v176
  %v178 = vpop.f32.mrf.mxu0
  %v179 = vadd.f32 0.0, %v178
  %180 = vmatmul.bf16.gmra.mxu0 %v104
  %v181 = vpop.f32.mrf.mxu0
  %v182 = vadd.f32 0.0, %v181
  %v183 = vpop.f32.mrf.mxu0
  %v184 = vadd.f32 0.0, %v183
  %185 = vmatmul.bf16.gmra.mxu0 %v105
  %v186 = vpop.f32.mrf.mxu0
  %v187 = vadd.f32 0.0, %v186
  %v188 = vpop.f32.mrf.mxu0
  %v189 = vadd.f32 0.0, %v188
  %190 = vmatmul.bf16.gmra.mxu0 %v106
  %v191 = vpop.f32.mrf.mxu0
  %v192 = vadd.f32 0.0, %v191
  %v193 = vpop.f32.mrf.mxu0
  %v194 = vadd.f32 0.0, %v193
  %195 = vmatmul.bf16.gmra.mxu0 %v107
  %v196 = vpop.f32.mrf.mxu0
  %v197 = vadd.f32 0.0, %v196
  %v198 = vpop.f32.mrf.mxu0
  %v199 = vadd.f32 0.0, %v198
  %200 = vmatmul.bf16.gmra.mxu0 %v108
  %v201 = vpop.f32.mrf.mxu0
  %v202 = vadd.f32 0.0, %v201
  %v203 = vpop.f32.mrf.mxu0
  %v204 = vadd.f32 0.0, %v203
  %205 = vmatmul.bf16.gmra.mxu0 %v109
  %v206 = vpop.f32.mrf.mxu0
  %v207 = vadd.f32 0.0, %v206
  %v208 = vpop.f32.mrf.mxu0
  %v209 = vadd.f32 0.0, %v208
  %210 = vmatmul.bf16.gmra.mxu0 %v110
  %v211 = vpop.f32.mrf.mxu0
  %v212 = vadd.f32 0.0, %v211
  %v213 = vpop.f32.mrf.mxu0
  %v214 = vadd.f32 0.0, %v213
  %215 = vdwg.mxu0
  %v216 = vpack.c.bf16 %v179, %v177
  %v217 = vpack.c.bf16 %v184, %v182
  %v218 = vpack.c.bf16 %v189, %v187
  %v219 = vpack.c.bf16 %v194, %v192
  %v220 = vpack.c.bf16 %v199, %v197
  %v221 = vpack.c.bf16 %v204, %v202
  %v222 = vpack.c.bf16 %v209, %v207
  %v223 = vpack.c.bf16 %v214, %v212
  %v224 = vld [vmem:[%s3] sm:$0x1]
  %v226 = vperm.slane %v224, 0
  %v244 = vunpack.c.l.b16 %v23
  %v245 = vunpack.c.l.b16 %v24
  %v246 = vunpack.c.l.b16 %v25
  %v247 = vunpack.c.l.b16 %v26
  %v248 = vunpack.c.l.b16 %v27
  %v249 = vunpack.c.l.b16 %v28
  %v250 = vunpack.c.l.b16 %v29
  %v251 = vunpack.c.l.b16 %v30
  %v252 = vunpack.c.l.b16 %v31
  %v253 = vunpack.c.l.b16 %v32
  %v254 = vunpack.c.l.b16 %v33
  %v255 = vunpack.c.l.b16 %v34
  %v256 = vunpack.c.l.b16 %v35
  %v257 = vunpack.c.l.b16 %v36
  %v258 = vunpack.c.l.b16 %v37
  %v259 = vunpack.c.l.b16 %v38
  %v260 = vpack.c.b16 %v245, %v244
  %v261 = vpack.c.b16 %v247, %v246
  %v262 = vpack.c.b16 %v249, %v248
  %v263 = vpack.c.b16 %v251, %v250
  %v264 = vpack.c.b16 %v253, %v252
  %v265 = vpack.c.b16 %v255, %v254
  %v266 = vpack.c.b16 %v257, %v256
  %v267 = vpack.c.b16 %v259, %v258
  %276 = vmatpush.bf16.msra.mxu0 %v223
  %277 = vmatpush.bf16.msra.mxu0 %v222
  %278 = vmatpush.bf16.msra.mxu0 %v221
  %279 = vmatpush.bf16.msra.mxu0 %v220
  %280 = vmatpush.bf16.msra.mxu0 %v219
  %281 = vmatpush.bf16.msra.mxu0 %v218
  %282 = vmatpush.bf16.msra.mxu0 %v217
  %283 = vmatpush.bf16.msra.mxu0 %v216
  %284 = vmatmul.bf16.gmra.mxu0 %v260
  %v285 = vpop.f32.mrf.mxu0
  %v286 = vadd.f32 %v226, %v285
  %v287 = vpop.f32.mrf.mxu0
  %v288 = vadd.f32 %v226, %v287
  %289 = vmatmul.bf16.gmra.mxu0 %v261
  %v290 = vpop.f32.mrf.mxu0
  %v291 = vadd.f32 %v226, %v290
  %v292 = vpop.f32.mrf.mxu0
  %v293 = vadd.f32 %v226, %v292
  %294 = vmatmul.bf16.gmra.mxu0 %v262
  %v295 = vpop.f32.mrf.mxu0
  %v296 = vadd.f32 %v226, %v295
  %v297 = vpop.f32.mrf.mxu0
  %v298 = vadd.f32 %v226, %v297
  %299 = vmatmul.bf16.gmra.mxu0 %v263
  %v300 = vpop.f32.mrf.mxu0
  %v301 = vadd.f32 %v226, %v300
  %v302 = vpop.f32.mrf.mxu0
  %v303 = vadd.f32 %v226, %v302
  %304 = vmatmul.bf16.gmra.mxu0 %v264
  %v305 = vpop.f32.mrf.mxu0
  %v306 = vadd.f32 %v226, %v305
  %v307 = vpop.f32.mrf.mxu0
  %v308 = vadd.f32 %v226, %v307
  %309 = vmatmul.bf16.gmra.mxu0 %v265
  %v310 = vpop.f32.mrf.mxu0
  %v311 = vadd.f32 %v226, %v310
  %v312 = vpop.f32.mrf.mxu0
  %v313 = vadd.f32 %v226, %v312
  %314 = vmatmul.bf16.gmra.mxu0 %v266
  %v315 = vpop.f32.mrf.mxu0
  %v316 = vadd.f32 %v226, %v315
  %v317 = vpop.f32.mrf.mxu0
  %v318 = vadd.f32 %v226, %v317
  %319 = vmatmul.bf16.gmra.mxu0 %v267
  %v320 = vpop.f32.mrf.mxu0
  %v321 = vadd.f32 %v226, %v320
  %v322 = vpop.f32.mrf.mxu0
  %v323 = vadd.f32 %v226, %v322
  %324 = vdwg.mxu0
  %v325 = vmax.f32 %v286, 0.0
  %v326 = vmax.f32 %v288, 0.0
  %v327 = vmax.f32 %v291, 0.0
  %v328 = vmax.f32 %v293, 0.0
  %v329 = vmax.f32 %v296, 0.0
  %v330 = vmax.f32 %v298, 0.0
  %v331 = vmax.f32 %v301, 0.0
  %v332 = vmax.f32 %v303, 0.0
  %v333 = vmax.f32 %v306, 0.0
  %v334 = vmax.f32 %v308, 0.0
  %v335 = vmax.f32 %v311, 0.0
  %v336 = vmax.f32 %v313, 0.0
  %v337 = vmax.f32 %v316, 0.0
  %v338 = vmax.f32 %v318, 0.0
  %v339 = vmax.f32 %v321, 0.0
  %v340 = vmax.f32 %v323, 0.0
  %v341 = vpack.c.bf16 %v326, %v325
  %v342 = vpack.c.bf16 %v328, %v327
  %v343 = vpack.c.bf16 %v330, %v329
  %v344 = vpack.c.bf16 %v332, %v331
  %v345 = vpack.c.bf16 %v334, %v333
  %v346 = vpack.c.bf16 %v336, %v335
  %v347 = vpack.c.bf16 %v338, %v337
  %v348 = vpack.c.bf16 %v340, %v339
  %v349 = vld [vmem:[%s4] sm:$0xf]
  %v350 = vld [vmem:[%s4 + $0x4] sm:$0xf]
  %v351 = vld [vmem:[%s4 + $0x8] sm:$0xf]
  %v352 = vld [vmem:[%s4 + $0xc] sm:$0xf]
  %v353 = vld [vmem:[%s4 + $0x10] sm:$0xf]
  %v354 = vld [vmem:[%s4 + $0x14] sm:$0xf]
  %v355 = vld [vmem:[%s4 + $0x18] sm:$0xf]
  %v356 = vld [vmem:[%s4 + $0x1c] sm:$0xf]
  %v357 = vld [vmem:[%s4 + $0x20] sm:$0xf]
  %v358 = vld [vmem:[%s4 + $0x24] sm:$0xf]
  %v359 = vld [vmem:[%s4 + $0x28] sm:$0xf]
  %v360 = vld [vmem:[%s4 + $0x2c] sm:$0xf]
  %v361 = vld [vmem:[%s4 + $0x30] sm:$0xf]
  %v362 = vld [vmem:[%s4 + $0x34] sm:$0xf]
  %v363 = vld [vmem:[%s4 + $0x38] sm:$0xf]
  %v364 = vld [vmem:[%s4 + $0x3c] sm:$0xf]
  %v381 = vunpack.c.l.b16 %v349
  %v382 = vunpack.c.l.b16 %v350
  %v383 = vunpack.c.l.b16 %v351
  %v384 = vunpack.c.l.b16 %v352
  %v385 = vunpack.c.l.b16 %v353
  %v386 = vunpack.c.l.b16 %v354
  %v387 = vunpack.c.l.b16 %v355
  %v388 = vunpack.c.l.b16 %v356
  %v389 = vunpack.c.l.b16 %v357
  %v390 = vunpack.c.l.b16 %v358
  %v391 = vunpack.c.l.b16 %v359
  %v392 = vunpack.c.l.b16 %v360
  %v393 = vunpack.c.l.b16 %v361
  %v394 = vunpack.c.l.b16 %v362
  %v395 = vunpack.c.l.b16 %v363
  %v396 = vunpack.c.l.b16 %v364
  %v397 = vpack.c.b16 %v382, %v381
  %v398 = vpack.c.b16 %v384, %v383
  %v399 = vpack.c.b16 %v386, %v385
  %v400 = vpack.c.b16 %v388, %v387
  %v401 = vpack.c.b16 %v390, %v389
  %v402 = vpack.c.b16 %v392, %v391
  %v403 = vpack.c.b16 %v394, %v393
  %v404 = vpack.c.b16 %v396, %v395
  %413 = vmatpush.bf16.msra.mxu0 %v404
  %414 = vmatpush.bf16.msra.mxu0 %v403
  %415 = vmatpush.bf16.msra.mxu0 %v402
  %416 = vmatpush.bf16.msra.mxu0 %v401
  %417 = vmatpush.bf16.msra.mxu0 %v400
  %418 = vmatpush.bf16.msra.mxu0 %v399
  %419 = vmatpush.bf16.msra.mxu0 %v398
  %420 = vmatpush.bf16.msra.mxu0 %v397
  %421 = vmatmul.bf16.gmra.mxu0 %v341
  %v422 = vpop.f32.mrf.mxu0
  %v423 = vadd.f32 0.0, %v422
  %v424 = vpop.f32.mrf.mxu0
  %v425 = vadd.f32 0.0, %v424
  %426 = vmatmul.bf16.gmra.mxu0 %v342
  %v427 = vpop.f32.mrf.mxu0
  %v428 = vadd.f32 0.0, %v427
  %v429 = vpop.f32.mrf.mxu0
  %v430 = vadd.f32 0.0, %v429
  %431 = vmatmul.bf16.gmra.mxu0 %v343
  %v432 = vpop.f32.mrf.mxu0
  %v433 = vadd.f32 0.0, %v432
  %v434 = vpop.f32.mrf.mxu0
  %v435 = vadd.f32 0.0, %v434
  %436 = vmatmul.bf16.gmra.mxu0 %v344
  %v437 = vpop.f32.mrf.mxu0
  %v438 = vadd.f32 0.0, %v437
  %v439 = vpop.f32.mrf.mxu0
  %v440 = vadd.f32 0.0, %v439
  %441 = vmatmul.bf16.gmra.mxu0 %v345
  %v442 = vpop.f32.mrf.mxu0
  %v443 = vadd.f32 0.0, %v442
  %v444 = vpop.f32.mrf.mxu0
  %v445 = vadd.f32 0.0, %v444
  %446 = vmatmul.bf16.gmra.mxu0 %v346
  %v447 = vpop.f32.mrf.mxu0
  %v448 = vadd.f32 0.0, %v447
  %v449 = vpop.f32.mrf.mxu0
  %v450 = vadd.f32 0.0, %v449
  %451 = vmatmul.bf16.gmra.mxu0 %v347
  %v452 = vpop.f32.mrf.mxu0
  %v453 = vadd.f32 0.0, %v452
  %v454 = vpop.f32.mrf.mxu0
  %v455 = vadd.f32 0.0, %v454
  %456 = vmatmul.bf16.gmra.mxu0 %v348
  %v457 = vpop.f32.mrf.mxu0
  %v458 = vadd.f32 0.0, %v457
  %v459 = vpop.f32.mrf.mxu0
  %v460 = vadd.f32 0.0, %v459
  %461 = vdwg.mxu0
  %v462 = vpack.c.bf16 %v425, %v423
  %v463 = vpack.c.bf16 %v430, %v428
  %v464 = vpack.c.bf16 %v435, %v433
  %v465 = vpack.c.bf16 %v440, %v438
  %v466 = vpack.c.bf16 %v445, %v443
  %v467 = vpack.c.bf16 %v450, %v448
  %v468 = vpack.c.bf16 %v455, %v453
  %v469 = vpack.c.bf16 %v460, %v458
  %v470 = vld [vmem:[%s5] sm:$0x1]
  %v472 = vperm.slane %v470, 0
  %474 = vmatpush.bf16.msra.mxu0 %v469
  %475 = vmatpush.bf16.msra.mxu0 %v468
  %476 = vmatpush.bf16.msra.mxu0 %v467
  %477 = vmatpush.bf16.msra.mxu0 %v466
  %478 = vmatpush.bf16.msra.mxu0 %v465
  %479 = vmatpush.bf16.msra.mxu0 %v464
  %480 = vmatpush.bf16.msra.mxu0 %v463
  %481 = vmatpush.bf16.msra.mxu0 %v462
  %482 = vmatmul.bf16.gmra.mxu0 %v260
  %v483 = vpop.f32.mrf.mxu0
  %v484 = vadd.f32 %v472, %v483
  %v485 = vpop.f32.mrf.mxu0
  %v486 = vadd.f32 %v472, %v485
  %487 = vmatmul.bf16.gmra.mxu0 %v261
  %v488 = vpop.f32.mrf.mxu0
  %v489 = vadd.f32 %v472, %v488
  %v490 = vpop.f32.mrf.mxu0
  %v491 = vadd.f32 %v472, %v490
  %492 = vmatmul.bf16.gmra.mxu0 %v262
  %v493 = vpop.f32.mrf.mxu0
  %v494 = vadd.f32 %v472, %v493
  %v495 = vpop.f32.mrf.mxu0
  %v496 = vadd.f32 %v472, %v495
  %497 = vmatmul.bf16.gmra.mxu0 %v263
  %v498 = vpop.f32.mrf.mxu0
  %v499 = vadd.f32 %v472, %v498
  %v500 = vpop.f32.mrf.mxu0
  %v501 = vadd.f32 %v472, %v500
  %502 = vmatmul.bf16.gmra.mxu0 %v264
  %v503 = vpop.f32.mrf.mxu0
  %v504 = vadd.f32 %v472, %v503
  %v505 = vpop.f32.mrf.mxu0
  %v506 = vadd.f32 %v472, %v505
  %507 = vmatmul.bf16.gmra.mxu0 %v265
  %v508 = vpop.f32.mrf.mxu0
  %v509 = vadd.f32 %v472, %v508
  %v510 = vpop.f32.mrf.mxu0
  %v511 = vadd.f32 %v472, %v510
  %512 = vmatmul.bf16.gmra.mxu0 %v266
  %v513 = vpop.f32.mrf.mxu0
  %v514 = vadd.f32 %v472, %v513
  %v515 = vpop.f32.mrf.mxu0
  %v516 = vadd.f32 %v472, %v515
  %517 = vmatmul.bf16.gmra.mxu0 %v267
  %v518 = vpop.f32.mrf.mxu0
  %v519 = vadd.f32 %v472, %v518
  %v520 = vpop.f32.mrf.mxu0
  %v521 = vadd.f32 %v472, %v520
  %522 = vdwg.mxu0
  %v523 = vmax.f32 %v484, 0.0
  %v524 = vmax.f32 %v486, 0.0
  %v525 = vmax.f32 %v489, 0.0
  %v526 = vmax.f32 %v491, 0.0
  %v527 = vmax.f32 %v494, 0.0
  %v528 = vmax.f32 %v496, 0.0
  %v529 = vmax.f32 %v499, 0.0
  %v530 = vmax.f32 %v501, 0.0
  %v531 = vmax.f32 %v504, 0.0
  %v532 = vmax.f32 %v506, 0.0
  %v533 = vmax.f32 %v509, 0.0
  %v534 = vmax.f32 %v511, 0.0
  %v535 = vmax.f32 %v514, 0.0
  %v536 = vmax.f32 %v516, 0.0
  %v537 = vmax.f32 %v519, 0.0
  %v538 = vmax.f32 %v521, 0.0
  %539 = vst [vmem:[%s6] sm:$0xff] %v523
  %540 = vst [vmem:[%s6 + $0x8] sm:$0xff] %v524
  %541 = vst [vmem:[%s6 + $0x10] sm:$0xff] %v525
  %542 = vst [vmem:[%s6 + $0x18] sm:$0xff] %v526
  %543 = vst [vmem:[%s6 + $0x20] sm:$0xff] %v527
  %544 = vst [vmem:[%s6 + $0x28] sm:$0xff] %v528
  %545 = vst [vmem:[%s6 + $0x30] sm:$0xff] %v529
  %546 = vst [vmem:[%s6 + $0x38] sm:$0xff] %v530
  %547 = vst [vmem:[%s6 + $0x40] sm:$0xff] %v531
  %548 = vst [vmem:[%s6 + $0x48] sm:$0xff] %v532
  %549 = vst [vmem:[%s6 + $0x50] sm:$0xff] %v533
  %550 = vst [vmem:[%s6 + $0x58] sm:$0xff] %v534
  %551 = vst [vmem:[%s6 + $0x60] sm:$0xff] %v535
  %552 = vst [vmem:[%s6 + $0x68] sm:$0xff] %v536
  %553 = vst [vmem:[%s6 + $0x70] sm:$0xff] %v537
  %554 = vst [vmem:[%s6 + $0x78] sm:$0xff] %v538
  // Predicated region
  $region26: #{gcn_dense_forward.1} parent=0 // pred_check
    _
  $region27: #{gcn_dense_forward.1} parent=0 // pred_check_branch
    %556 = sbr.rel (0) target = $region29
  $region28: #{gcn_dense_forward.1} parent=0 // pred_region
    _
  $region29: #{gcn_dense_forward.1} parent=0 // pred_fallthru
    _
  // Predicated region
  $region30: #{gcn_dense_forward.1} parent=0 // pred_check
    _
  $region31: #{gcn_dense_forward.1} parent=0 // pred_check_branch
    %558 = sbr.rel (0) target = $region33
  $region32: #{gcn_dense_forward.1} parent=0 // pred_region
    _
  $region33: #{gcn_dense_forward.1} parent=0 // pred_fallthru
    _

</llo_original>
